<compile_context>
chip_gen: v6e
topology: v6e:2x2x1
jax: 0.10.0
libtpu: 0.0.40
codegen_flags: <defaults>
</compile_context>

<pallas_src>
import functools

import jax
import jax.numpy as jnp
from jax.experimental import pallas as pl
from jax.experimental.pallas import tpu as pltpu


def _round_up(v, m):
    return (v + m - 1) // m * m


def _make_layout(num_classes, bbox_dim):
    """Packed column layout of the fused 8-head output slab.

    The five class-score heads (cls, det, ref1, ref2, ref3) are first-fit
    packed into 128-lane groups at the *front* of the slab so the in-kernel
    row softmaxes only ever slice at 128-aligned lane boundaries; the three
    bbox heads (no softmax, no in-kernel slicing) follow contiguously.

    Returns (widths, offsets, sm_width, d_pad): per-head widths/offsets in
    order [cls, det, ref1, ref2, ref3, bbox1, bbox2, bbox3], the (multiple of
    128) width of the class-head region, and the total slab width.
    """
    if num_classes <= 128:
        group_used = []
        cls_offsets = []
        for _ in range(5):
            for gi, used in enumerate(group_used):
                if used + num_classes <= 128:
                    cls_offsets.append(gi * 128 + used)
                    group_used[gi] += num_classes
                    break
            else:
                cls_offsets.append(len(group_used) * 128)
                group_used.append(num_classes)
        sm_width = len(group_used) * 128
    else:  # very wide class vocab: give each class head its own aligned group
        gw = _round_up(num_classes, 128)
        cls_offsets = [i * gw for i in range(5)]
        sm_width = 5 * gw
    bbox_offsets = [sm_width + i * bbox_dim for i in range(3)]
    d_pad = _round_up(sm_width + 3 * bbox_dim, 128)
    widths = (num_classes,) * 5 + (bbox_dim,) * 3
    return widths, tuple(cls_offsets + bbox_offsets), sm_width, d_pad


def _vmem_limit_bytes():
    """Generation-aware scoped-VMEM limit: half of physical, capped at 64 MiB."""
    try:
        cap = pltpu.get_tpu_info().vmem_capacity_bytes
    except Exception:  # info query unavailable -> conservative (v7x-safe)
        cap = 64 * 1024 * 1024
    return int(min(cap // 2, 64 * 1024 * 1024))


def _pick_tile_n(c, d_pad, limit_bytes):
    """Largest N-tile whose working set fits ~75% of the scoped-VMEM limit.

    BlockSpec double-buffers *every* input (including the grid-invariant
    weight slab), so each input term is counted twice; the f32 temporaries of
    the fused matmul + masked softmaxes are budgeted explicitly.
    """
    budget = int(limit_bytes * 0.75)
    for t in (2048, 1024, 512, 256, 128, 64, 32, 16, 8):
        need = (2 * t * c * 2            # bf16 activation tile, double-buffered
                + 2 * c * d_pad * 2      # bf16 weight slab, double-buffered
                + 2 * 8 * d_pad * 4      # bias row (sublane-padded), double-buffered
                + 2 * t * d_pad * 4      # f32 output tile, double-buffered
                + 4 * t * d_pad * 4)     # f32 temporaries (logits + softmax temps)
        if need <= budget:
            return t
    return 8


def _mist_head_kernel(x_ref, w_ref, b_ref, out_ref, *, sm_cols, sm_width):
    # x_ref: (TILE_N, C) bf16 with C on lanes.  One fused bf16 MXU matmul
    # covers all 8 Linear heads; accumulate and post-process in f32.
    logits = jnp.dot(x_ref[...], w_ref[...],
                     preferred_element_type=jnp.float32) + b_ref[...]
    if sm_cols:
        # Eval-only row softmaxes (cls, ref1-3).  All class heads live in the
        # first sm_width (multiple of 128) columns -> lane-aligned slice.
        g = logits[:, :sm_width]
        lane = jax.lax.broadcasted_iota(jnp.int32, g.shape, 1)
        out_g = g
        for off, w in sm_cols:                           # static unroll
            in_head = jnp.logical_and(lane >= off, lane < off + w)
            z = jnp.where(in_head, g, -1e30)
            m = jnp.max(z, axis=1, keepdims=True)
            e = jnp.exp(z - m)                           # exactly 0 outside head
            s = jnp.sum(e, axis=1, keepdims=True)
            out_g = jnp.where(in_head, e / s, out_g)     # exact normalization
        out_ref[:, :sm_width] = out_g                    # lane-dense stores
        out_ref[:, sm_width:] = logits[:, sm_width:]
    else:
        out_ref[...] = logits


def _det_segment_softmax_kernel(det_ref, out_ref, *, seg_bounds):
    # Per-image softmax over the proposal axis (dim 0); columns independent.
    # Static per-segment slices -> O(N) work total.
    for start, end in seg_bounds:                        # static unroll
        z = det_ref[start:end, :]
        m = jnp.max(z, axis=0, keepdims=True)
        e = jnp.exp(z - m)
        s = jnp.sum(e, axis=0, keepdims=True)
        out_ref[start:end, :] = e / s


def init_mist_params(key, in_channels, num_classes, cls_agnostic_bbox_reg=False):
    """torch init: weight ~ N(0, 0.001), bias = 0.  Weights are (C, out)."""
    num_bbox_reg_classes = 2 if cls_agnostic_bbox_reg else num_classes
    bbox_dim = num_bbox_reg_classes * 4
    widths = [num_classes] * 5 + [bbox_dim] * 3
    keys = jax.random.split(key, len(widths))
    ws = [0.001 * jax.random.normal(k, (in_channels, d), jnp.float32)
          for k, d in zip(keys, widths)]
    bs = [jnp.zeros((d,), jnp.float32) for d in widths]
    return ws, bs, bbox_dim


def pack_mist_params(ws, bs, num_classes, bbox_dim):
    """Pack per-head params into the packed fused column slab (bf16 weights)."""
    widths, offsets, _, d_pad = _make_layout(num_classes, bbox_dim)
    c = ws[0].shape[0]
    w_slab = jnp.zeros((c, d_pad), jnp.float32)
    b_slab = jnp.zeros((1, d_pad), jnp.float32)
    for w, b, off, rw in zip(ws, bs, offsets, widths):
        w_slab = w_slab.at[:, off:off + rw].set(w)
        b_slab = b_slab.at[:, off:off + rw].set(b[None, :])
    return w_slab.astype(jnp.bfloat16), b_slab


def mist_predictor_forward(x, w_slab, b_slab, proposal_lens, *, num_classes,
                           bbox_dim, training=False, tile_n=None):
    """x: (N, C, H, W) NCHW or (N, C).  proposal_lens: static tuple of ints."""
    widths, offsets, sm_width, d_pad = _make_layout(num_classes, bbox_dim)
    assert w_slab.shape[1] == d_pad and b_slab.shape[1] == d_pad

    if x.ndim == 4:
        # AdaptiveAvgPool2d(1): a single XLA reduce pass straight over NCHW —
        # the heavy (N, C, H, W) tensor is read from HBM exactly once and the
        # Pallas kernel only consumes the tiny pooled (N, C) activations.
        pooled = jnp.mean(x.astype(jnp.float32), axis=(2, 3))
    else:
        pooled = x.astype(jnp.float32)
    n, c = pooled.shape
    assert sum(proposal_lens) == n
    pooled = pooled.astype(jnp.bfloat16)          # halve kernel input DMA bytes

    vmem_limit = _vmem_limit_bytes()
    if tile_n is None:
        tile_n = _pick_tile_n(c, d_pad, vmem_limit)
    # Keep >=4 grid steps when N allows (v7x megacore sharding + pipelining).
    tile_n = max(8, min(tile_n, _round_up(-(-n // 4), 8)))
    n_pad = _round_up(n, tile_n)
    if n_pad != n:
        pooled = jnp.pad(pooled, ((0, n_pad - n), (0, 0)))

    # Eval-mode row softmaxes: cls, ref1, ref2, ref3 (head indices 0, 2, 3, 4).
    sm_cols = () if training else tuple(
        (offsets[i], num_classes) for i in (0, 2, 3, 4))

    slab = pl.pallas_call(
        functools.partial(_mist_head_kernel, sm_cols=sm_cols, sm_width=sm_width),
        out_shape=jax.ShapeDtypeStruct((n_pad, d_pad), jnp.float32),
        grid=(n_pad // tile_n,),
        in_specs=[
            pl.BlockSpec((tile_n, c), lambda i: (i, 0)),
            pl.BlockSpec((c, d_pad), lambda i: (0, 0)),   # grid-invariant weights
            pl.BlockSpec((1, d_pad), lambda i: (0, 0)),   # grid-invariant bias
        ],
        out_specs=pl.BlockSpec((tile_n, d_pad), lambda i: (i, 0)),
        compiler_params=pltpu.CompilerParams(
            dimension_semantics=("parallel",),
            vmem_limit_bytes=vmem_limit),
    )(pooled, w_slab, b_slab)

    K, B = num_classes, bbox_dim
    # Padded rows n..n_pad hold bias-only values; they are sliced off here.
    cls = slab[:n, offsets[0]:offsets[0] + K]
    det_raw = slab[:n, offsets[1]:offsets[1] + K]
    r1 = slab[:n, offsets[2]:offsets[2] + K]
    r2 = slab[:n, offsets[3]:offsets[3] + K]
    r3 = slab[:n, offsets[4]:offsets[4] + K]
    bb1 = slab[:n, offsets[5]:offsets[5] + B]
    bb2 = slab[:n, offsets[6]:offsets[6] + B]
    bb3 = slab[:n, offsets[7]:offsets[7] + B]

    if training:
        det = det_raw
    else:
        seg_bounds, off = [], 0
        for l in proposal_lens:
            seg_bounds.append((off, off + l))
            off += l
        det = pl.pallas_call(
            functools.partial(_det_segment_softmax_kernel,
                              seg_bounds=tuple(seg_bounds)),
            out_shape=jax.ShapeDtypeStruct((n, K), jnp.float32),
            in_specs=[pl.BlockSpec(memory_space=pltpu.MemorySpace.VMEM)],
            out_specs=pl.BlockSpec(memory_space=pltpu.MemorySpace.VMEM),
        )(det_raw)

    return cls, det, [r1, r2, r3], [bb1, bb2, bb3]


def _reference_forward(x, ws, bs, proposal_lens, *, training=False):
    """Pure-JAX f32 reference of the PyTorch forward (eval/train)."""
    if x.ndim == 4:
        x = jnp.mean(x, axis=(2, 3))
    cls, det, r1, r2, r3, bb1, bb2, bb3 = [x @ w + b for w, b in zip(ws, bs)]
    if not training:
        cls = jax.nn.softmax(cls, axis=1)
        r1 = jax.nn.softmax(r1, axis=1)
        r2 = jax.nn.softmax(r2, axis=1)
        r3 = jax.nn.softmax(r3, axis=1)
        pieces, off = [], 0
        for l in proposal_lens:
            pieces.append(jax.nn.softmax(det[off:off + l], axis=0))
            off += l
        det = jnp.concatenate(pieces, axis=0)
    return cls, det, [r1, r2, r3], [bb1, bb2, bb3]


if __name__ == "__main__":
    key = jax.random.PRNGKey(0)
    k_x, k_w = jax.random.split(key)

    # Small synthetic config: 192 proposals over 2 images, C=128, 7x7 ROI
    # features, 20 classes, class-specific bbox regression.  The >=4-step grid
    # clamp makes tile_n = 48, so the pipeline actually iterates (4 steps).
    N, C, H, W = 192, 128, 7, 7
    NUM_CLASSES = 20
    PROPOSAL_LENS = (112, 80)

    x = jax.random.normal(k_x, (N, C, H, W), jnp.float32)
    ws, bs, bbox_dim = init_mist_params(k_w, C, NUM_CLASSES,
                                        cls_agnostic_bbox_reg=False)
    w_slab, b_slab = pack_mist_params(ws, bs, NUM_CLASSES, bbox_dim)

    for training in (False, True):
        out = mist_predictor_forward(
            x, w_slab, b_slab, PROPOSAL_LENS, num_classes=NUM_CLASSES,
            bbox_dim=bbox_dim, training=training)
        jax.block_until_ready(out)
        ref = _reference_forward(x, ws, bs, PROPOSAL_LENS, training=training)
        for o, r in zip(jax.tree_util.tree_leaves(out),
                        jax.tree_util.tree_leaves(ref)):
            assert o.shape == r.shape and o.dtype == r.dtype
            err = float(jnp.max(jnp.abs(o - r)))
            assert err < 2e-3, (training, err)

    print("KERNEL_OK")
</pallas_src>

<mosaic_0001>
module attributes {stable_mosaic.version = 11 : i64} {
  func.func @_mist_head_kernel(%arg0: i32, %arg1: memref<48x128xbf16, #tpu.memory_space<vmem>>, %arg2: memref<128x384xbf16, #tpu.memory_space<vmem>>, %arg3: memref<1x384xf32, #tpu.memory_space<vmem>>, %arg4: memref<48x384xf32, #tpu.memory_space<vmem>>) attributes {dimension_semantics = [#tpu.dimension_semantics<parallel>], iteration_bounds = array<i64: 4>, scalar_prefetch = 0 : i64, scratch_operands = 0 : i64, tpu.core_type = #tpu.core_type<tc>, window_params = [{transform_indices = @transform_0, window_bounds = array<i64: 48, 128>}, {pipeline_mode = #tpu.pipeline_mode<synchronous>, transform_indices = @transform_1, window_bounds = array<i64: 128, 384>}, {pipeline_mode = #tpu.pipeline_mode<synchronous>, transform_indices = @transform_2, window_bounds = array<i64: 1, 384>}, {transform_indices = @transform_3, window_bounds = array<i64: 48, 384>}]} {
    %c0 = arith.constant 0 : index
    %c0_0 = arith.constant 0 : index
    %0 = vector.load %arg1[%c0, %c0_0] : memref<48x128xbf16, #tpu.memory_space<vmem>>, vector<48x128xbf16>
    %c0_1 = arith.constant 0 : index
    %c0_2 = arith.constant 0 : index
    %1 = vector.load %arg2[%c0_1, %c0_2] : memref<128x384xbf16, #tpu.memory_space<vmem>>, vector<128x384xbf16>
    %cst = arith.constant dense<0.000000e+00> : vector<48x384xf32>
    %2 = tpu.matmul %0, %1, %cst {dimension_numbers = #tpu.dot_dimension_numbers<[1], [0], [0], [1], [0, 0, 1, 1], [], []>} : vector<48x128xbf16>, vector<128x384xbf16>, vector<48x384xf32> -> vector<48x384xf32>
    %c0_3 = arith.constant 0 : index
    %c0_4 = arith.constant 0 : index
    %3 = vector.load %arg3[%c0_3, %c0_4] : memref<1x384xf32, #tpu.memory_space<vmem>>, vector<1x384xf32>
    %4 = vector.broadcast %3 : vector<1x384xf32> to vector<48x384xf32>
    %5 = arith.addf %2, %4 : vector<48x384xf32>
    %6 = vector.extract_strided_slice %5 {offsets = [0, 0], sizes = [48, 128], strides = [1, 1]} : vector<48x384xf32> to vector<48x128xf32>
    %7 = tpu.iota {dimensions = array<i32: 1>} : vector<48x128xi32>
    %c0_i32 = arith.constant 0 : i32
    %8 = vector.broadcast %c0_i32 : i32 to vector<48x128xi32>
    %9 = arith.cmpi sge, %7, %8 : vector<48x128xi32>
    %c20_i32 = arith.constant 20 : i32
    %10 = vector.broadcast %c20_i32 : i32 to vector<48x128xi32>
    %11 = arith.cmpi slt, %7, %10 : vector<48x128xi32>
    %12 = arith.andi %9, %11 : vector<48x128xi1>
    %cst_5 = arith.constant -1.000000e+30 : f32
    %13 = vector.broadcast %cst_5 : f32 to vector<48x128xf32>
    %14 = arith.select %12, %6, %13 : vector<48x128xi1>, vector<48x128xf32>
    %cst_6 = arith.constant dense<0xFF800000> : vector<48xf32>
    %15 = vector.multi_reduction <maximumf>, %14, %cst_6 [1] : vector<48x128xf32> to vector<48xf32>
    %16 = vector.shape_cast %15 : vector<48xf32> to vector<48x1xf32>
    %17 = vector.broadcast %16 : vector<48x1xf32> to vector<48x128xf32>
    %18 = arith.subf %14, %17 : vector<48x128xf32>
    %19 = math.exp %18 : vector<48x128xf32>
    %cst_7 = arith.constant dense<0.000000e+00> : vector<48xf32>
    %20 = vector.multi_reduction <add>, %19, %cst_7 [1] : vector<48x128xf32> to vector<48xf32>
    %21 = vector.shape_cast %20 : vector<48xf32> to vector<48x1xf32>
    %22 = vector.broadcast %21 : vector<48x1xf32> to vector<48x128xf32>
    %23 = arith.divf %19, %22 : vector<48x128xf32>
    %24 = arith.select %12, %23, %6 : vector<48x128xi1>, vector<48x128xf32>
    %c40_i32 = arith.constant 40 : i32
    %25 = vector.broadcast %c40_i32 : i32 to vector<48x128xi32>
    %26 = arith.cmpi sge, %7, %25 : vector<48x128xi32>
    %c60_i32 = arith.constant 60 : i32
    %27 = vector.broadcast %c60_i32 : i32 to vector<48x128xi32>
    %28 = arith.cmpi slt, %7, %27 : vector<48x128xi32>
    %29 = arith.andi %26, %28 : vector<48x128xi1>
    %cst_8 = arith.constant -1.000000e+30 : f32
    %30 = vector.broadcast %cst_8 : f32 to vector<48x128xf32>
    %31 = arith.select %29, %6, %30 : vector<48x128xi1>, vector<48x128xf32>
    %cst_9 = arith.constant dense<0xFF800000> : vector<48xf32>
    %32 = vector.multi_reduction <maximumf>, %31, %cst_9 [1] : vector<48x128xf32> to vector<48xf32>
    %33 = vector.shape_cast %32 : vector<48xf32> to vector<48x1xf32>
    %34 = vector.broadcast %33 : vector<48x1xf32> to vector<48x128xf32>
    %35 = arith.subf %31, %34 : vector<48x128xf32>
    %36 = math.exp %35 : vector<48x128xf32>
    %cst_10 = arith.constant dense<0.000000e+00> : vector<48xf32>
    %37 = vector.multi_reduction <add>, %36, %cst_10 [1] : vector<48x128xf32> to vector<48xf32>
    %38 = vector.shape_cast %37 : vector<48xf32> to vector<48x1xf32>
    %39 = vector.broadcast %38 : vector<48x1xf32> to vector<48x128xf32>
    %40 = arith.divf %36, %39 : vector<48x128xf32>
    %41 = arith.select %29, %40, %24 : vector<48x128xi1>, vector<48x128xf32>
    %c60_i32_11 = arith.constant 60 : i32
    %42 = vector.broadcast %c60_i32_11 : i32 to vector<48x128xi32>
    %43 = arith.cmpi sge, %7, %42 : vector<48x128xi32>
    %c80_i32 = arith.constant 80 : i32
    %44 = vector.broadcast %c80_i32 : i32 to vector<48x128xi32>
    %45 = arith.cmpi slt, %7, %44 : vector<48x128xi32>
    %46 = arith.andi %43, %45 : vector<48x128xi1>
    %cst_12 = arith.constant -1.000000e+30 : f32
    %47 = vector.broadcast %cst_12 : f32 to vector<48x128xf32>
    %48 = arith.select %46, %6, %47 : vector<48x128xi1>, vector<48x128xf32>
    %cst_13 = arith.constant dense<0xFF800000> : vector<48xf32>
    %49 = vector.multi_reduction <maximumf>, %48, %cst_13 [1] : vector<48x128xf32> to vector<48xf32>
    %50 = vector.shape_cast %49 : vector<48xf32> to vector<48x1xf32>
    %51 = vector.broadcast %50 : vector<48x1xf32> to vector<48x128xf32>
    %52 = arith.subf %48, %51 : vector<48x128xf32>
    %53 = math.exp %52 : vector<48x128xf32>
    %cst_14 = arith.constant dense<0.000000e+00> : vector<48xf32>
    %54 = vector.multi_reduction <add>, %53, %cst_14 [1] : vector<48x128xf32> to vector<48xf32>
    %55 = vector.shape_cast %54 : vector<48xf32> to vector<48x1xf32>
    %56 = vector.broadcast %55 : vector<48x1xf32> to vector<48x128xf32>
    %57 = arith.divf %53, %56 : vector<48x128xf32>
    %58 = arith.select %46, %57, %41 : vector<48x128xi1>, vector<48x128xf32>
    %c80_i32_15 = arith.constant 80 : i32
    %59 = vector.broadcast %c80_i32_15 : i32 to vector<48x128xi32>
    %60 = arith.cmpi sge, %7, %59 : vector<48x128xi32>
    %c100_i32 = arith.constant 100 : i32
    %61 = vector.broadcast %c100_i32 : i32 to vector<48x128xi32>
    %62 = arith.cmpi slt, %7, %61 : vector<48x128xi32>
    %63 = arith.andi %60, %62 : vector<48x128xi1>
    %cst_16 = arith.constant -1.000000e+30 : f32
    %64 = vector.broadcast %cst_16 : f32 to vector<48x128xf32>
    %65 = arith.select %63, %6, %64 : vector<48x128xi1>, vector<48x128xf32>
    %cst_17 = arith.constant dense<0xFF800000> : vector<48xf32>
    %66 = vector.multi_reduction <maximumf>, %65, %cst_17 [1] : vector<48x128xf32> to vector<48xf32>
    %67 = vector.shape_cast %66 : vector<48xf32> to vector<48x1xf32>
    %68 = vector.broadcast %67 : vector<48x1xf32> to vector<48x128xf32>
    %69 = arith.subf %65, %68 : vector<48x128xf32>
    %70 = math.exp %69 : vector<48x128xf32>
    %cst_18 = arith.constant dense<0.000000e+00> : vector<48xf32>
    %71 = vector.multi_reduction <add>, %70, %cst_18 [1] : vector<48x128xf32> to vector<48xf32>
    %72 = vector.shape_cast %71 : vector<48xf32> to vector<48x1xf32>
    %73 = vector.broadcast %72 : vector<48x1xf32> to vector<48x128xf32>
    %74 = arith.divf %70, %73 : vector<48x128xf32>
    %75 = arith.select %63, %74, %58 : vector<48x128xi1>, vector<48x128xf32>
    %c0_19 = arith.constant 0 : index
    %c0_20 = arith.constant 0 : index
    %76 = vector.load %arg4[%c0_19, %c0_20] : memref<48x384xf32, #tpu.memory_space<vmem>>, vector<48x128xf32>
    tpu.vector_store %arg4[%c0_19, %c0_20], %75 {strides = array<i32>} : memref<48x384xf32, #tpu.memory_space<vmem>>, vector<48x128xf32>,
    %77 = vector.extract_strided_slice %5 {offsets = [0, 128], sizes = [48, 256], strides = [1, 1]} : vector<48x384xf32> to vector<48x256xf32>
    %c0_21 = arith.constant 0 : index
    %c128 = arith.constant 128 : index
    %78 = vector.load %arg4[%c0_21, %c128] : memref<48x384xf32, #tpu.memory_space<vmem>>, vector<48x256xf32>
    tpu.vector_store %arg4[%c0_21, %c128], %77 {strides = array<i32>} : memref<48x384xf32, #tpu.memory_space<vmem>>, vector<48x256xf32>,
    return
  }
  func.func @transform_0(%arg0: i32) -> (i32, i32) {
    %c0_i32 = arith.constant 0 : i32
    %c0_i32_0 = arith.constant 0 : i32
    return %arg0, %c0_i32 : i32, i32
  }
  func.func @transform_1(%arg0: i32) -> (i32, i32) {
    %c0_i32 = arith.constant 0 : i32
    %c0_i32_0 = arith.constant 0 : i32
    %c0_i32_1 = arith.constant 0 : i32
    return %c0_i32, %c0_i32_0 : i32, i32
  }
  func.func @transform_2(%arg0: i32) -> (i32, i32) {
    %c0_i32 = arith.constant 0 : i32
    %c0_i32_0 = arith.constant 0 : i32
    %c0_i32_1 = arith.constant 0 : i32
    return %c0_i32, %c0_i32_0 : i32, i32
  }
  func.func @transform_3(%arg0: i32) -> (i32, i32) {
    %c0_i32 = arith.constant 0 : i32
    %c0_i32_0 = arith.constant 0 : i32
    return %arg0, %c0_i32 : i32, i32
  }
}

</mosaic_0001>

<llo_original>
// kernel: tpu_custom_call.1
$region0: #{tpu_custom_call.1}
  #allocation0 [shape = 'u32[]', space=smem, size = 0x4, offset = 0x4, fixed_abs, tag = 'smem constant byte address 0x4 - core index']
  #allocation1 [shape = 'u32[144,128]{1,0:T(1,128)}', space=vmem, size = 0x12000, scoped, tag = 'internal scratch']
  %s0 = inlined_call_operand.hbm [shape: bf16[192,128], index: 0, kind: input, shape index: {}]
  %s1 = inlined_call_operand.hbm [shape: bf16[128,384], index: 1, kind: input, shape index: {}]
  %s2 = inlined_call_operand.vmem [shape: f32[1,384], index: 2, kind: input, shape index: {}]
  %s3 = inlined_call_operand.hbm [shape: f32[192,384], index: 3, kind: output, shape index: {}]
  %s4 = sld [smem:[#allocation0]]
  $region53: #{tpu_custom_call.1} parent=0
    _
  %s6 = ssub.s32 1, %s4
  %s7 = scalar_select 0, %s6, %s4
  $region1: #{tpu_custom_call.1} parent=0
    #allocation2 [shape = 'u8[24576]{0}', space=vmem, size = 0x6000, scoped, tag = 'input window, operand 0']
    #allocation3 [shape = 's32[2]{0}', space=sflag, size = 0x8, scoped, tag = 'scoped memory for tpu_custom_call.1']
    #allocation4 [shape = 's32[2]{0}', space=sflag, size = 0x8, scoped, tag = 'scoped memory for tpu_custom_call.1']
    #allocation5 [shape = 'u8[98304]{0}', space=vmem, size = 0x18000, scoped, tag = 'input window, operand 1, single buffered']
    #allocation6 [shape = 's32[1]{0}', space=sflag, size = 0x4, scoped, tag = 'scoped memory for tpu_custom_call.1']
    #allocation7 [shape = 'u8[147456]{0}', space=vmem, size = 0x24000, scoped, tag = 'output window, operand 0']
    %8 = vsyncpa [#allocation3], 0
    %s9 = scalar_lea.sflag [#allocation3], 1
    %10 = vsyncpa %s9, 0
    %11 = vsyncpa [#allocation6], 0
    %12 = vsyncpa [#allocation4], 0
    %s13 = scalar_lea.sflag [#allocation4], 1
    %14 = vsyncpa %s13, 0
    loop: start=0, step=1, limit=6
    $region2: #{tpu_custom_call.1} parent=1 // loop_pre_header
      _
    $region3: #{tpu_custom_call.1} parent=1 // loop_header
      %s16 = sphi 0, %s20
      %p17 = scmp.ge.s32.totalorder %s16, 6
      %s26 = sphi 0, %s28
      %s29 = sphi 0, %s26
      %s30 = sphi 0, %s29
      %s46 = sphi 0, %s30
      %s50 = sphi 0, %s50
      %s52 = sphi 0, %s50
      %s53 = sphi 0, %s52
      %s67 = sphi 0, %s53
      %s71 = sphi 0, %s71
      %s73 = sphi 0, %s71
      %s74 = sphi 0, %s73
      %s88 = sphi 0, %s74
      %s94 = sphi 0, %s96
      %s97 = sphi 0, %s94
      %s98 = sphi 0, %s97
      %s114 = sphi 0, %s98
    $region4: #{tpu_custom_call.1} parent=1 // loop_header_branch
      %19 = sbr.rel (%p17) target = $region8
    $region5: #{tpu_custom_call.1} parent=1 // loop_body
      %s21 = ssub.s32 %s16, 1
      %s22 = ssub.s32 %s16, 2
      %s23 = sadd.s32 %s16, 1
      %s24 = ssub.s32 %s16, %s23
      %p25 = scmp.eq.s32.totalorder %s24, 0
      %s27 = sadd.s32 %s26, 1
      %s28 = scalar_select %p25, %s26, %s27
      %p31 = pneg %p25
      %p32 = scmp.eq.s32.totalorder %s16, 3
      %p33 = por %p31, %p32
      %p34 = scmp.ne.s32.totalorder %s26, %s29
      %p35 = scmp.eq.s32.totalorder %s16, 0
      %p36 = por %p34, %p35
      %p37 = scmp.ne.s32.totalorder %s26, %s29
      %p38 = scmp.eq.s32.totalorder %s21, 3
      %p39 = por %p37, %p38
      %p40 = scmp.ne.s32.totalorder %s29, %s30
      %p41 = scmp.eq.s32.totalorder %s21, 0
      %p42 = por %p40, %p41
      %p43 = scmp.ne.s32.totalorder %s29, %s30
      %p44 = scmp.eq.s32.totalorder %s22, 3
      %p45 = por %p43, %p44
      %p47 = scmp.ne.s32.totalorder %s30, %s46
      %p48 = scmp.eq.s32.totalorder %s22, 0
      %p49 = por %p47, %p48
      %s51 = sadd.s32 %s50, 1
      %p54 = scmp.eq.s32.totalorder %s16, 3
      %p55 = scmp.ne.s32.totalorder %s50, %s52
      %p56 = scmp.eq.s32.totalorder %s16, 0
      %p57 = por %p55, %p56
      %p58 = scmp.ne.s32.totalorder %s50, %s52
      %p59 = scmp.eq.s32.totalorder %s21, 3
      %p60 = por %p58, %p59
      %p61 = scmp.ne.s32.totalorder %s52, %s53
      %p62 = scmp.eq.s32.totalorder %s21, 0
      %p63 = por %p61, %p62
      %p64 = scmp.ne.s32.totalorder %s52, %s53
      %p65 = scmp.eq.s32.totalorder %s22, 3
      %p66 = por %p64, %p65
      %p68 = scmp.ne.s32.totalorder %s53, %s67
      %p69 = scmp.eq.s32.totalorder %s22, 0
      %p70 = por %p68, %p69
      %s72 = sadd.s32 %s71, 1
      %p75 = scmp.eq.s32.totalorder %s16, 3
      %p76 = scmp.ne.s32.totalorder %s71, %s73
      %p77 = scmp.eq.s32.totalorder %s16, 0
      %p78 = por %p76, %p77
      %p79 = scmp.ne.s32.totalorder %s71, %s73
      %p80 = scmp.eq.s32.totalorder %s21, 3
      %p81 = por %p79, %p80
      %p82 = scmp.ne.s32.totalorder %s73, %s74
      %p83 = scmp.eq.s32.totalorder %s21, 0
      %p84 = por %p82, %p83
      %p85 = scmp.ne.s32.totalorder %s73, %s74
      %p86 = scmp.eq.s32.totalorder %s22, 3
      %p87 = por %p85, %p86
      %p89 = scmp.ne.s32.totalorder %s74, %s88
      %p90 = scmp.eq.s32.totalorder %s22, 0
      %p91 = por %p89, %p90
      %s92 = ssub.s32 %s16, %s23
      %p93 = scmp.eq.s32.totalorder %s92, 0
      %s95 = sadd.s32 %s94, 1
      %s96 = scalar_select %p93, %s94, %s95
      %p99 = pneg %p93
      %p100 = scmp.eq.s32.totalorder %s16, 3
      %p101 = por %p99, %p100
      %p102 = scmp.ne.s32.totalorder %s94, %s97
      %p103 = scmp.eq.s32.totalorder %s16, 0
      %p104 = por %p102, %p103
      %p105 = scmp.ne.s32.totalorder %s94, %s97
      %p106 = scmp.eq.s32.totalorder %s21, 3
      %p107 = por %p105, %p106
      %p108 = scmp.ne.s32.totalorder %s97, %s98
      %p109 = scmp.eq.s32.totalorder %s21, 0
      %p110 = por %p108, %p109
      %p111 = scmp.ne.s32.totalorder %s97, %s98
      %p112 = scmp.eq.s32.totalorder %s22, 3
      %p113 = por %p111, %p112
      %p115 = scmp.ne.s32.totalorder %s98, %s114
      %p116 = scmp.eq.s32.totalorder %s22, 0
      %p117 = por %p115, %p116
      %p118 = scmp.le.s32.totalorder 1, %s16
      %p119 = scmp.lt.s32.totalorder %s16, 5
      %p120 = pnand %p118, %p119
      %p121 = pneg %p120
      // Predicated region
      $region9: #{tpu_custom_call.1} parent=5 // pred_check
        _
      $region10: #{tpu_custom_call.1} parent=5 // pred_check_branch
        %123 = sbr.rel (%p120) target = $region12
      $region11: #{tpu_custom_call.1} parent=5 // pred_region
        %s124 = ssub.s32 %s16, 1
        // Predicated region
        $region13: #{tpu_custom_call.1} parent=11 // pred_check
          %p125 = pneg %p63
        $region14: #{tpu_custom_call.1} parent=11 // pred_check_branch
          %127 = sbr.rel (%p125) target = $region16
        $region15: #{tpu_custom_call.1} parent=11 // pred_region
          %s129 = ssub.s32 3072, 3072
          %130 = vsyncadd [#allocation6], %s129
          %s131 = sshll.u32 [#allocation5], 4
          %s132 = int_to_ptr.vmem [resolvable:$true] %s131
          %137 = dma.hbm_to_vmem [thread:$0]  %s1, 3072, %s132, [#allocation6], 192, 192, 12
        $region16: #{tpu_custom_call.1} parent=11 // pred_fallthru
          _
        // Predicated region
        $region17: #{tpu_custom_call.1} parent=11 // pred_check
          %p138 = pneg %p84
        $region18: #{tpu_custom_call.1} parent=11 // pred_check_branch
          %140 = sbr.rel (%p138) target = $region20
        $region19: #{tpu_custom_call.1} parent=11 // pred_region
          _
        $region20: #{tpu_custom_call.1} parent=11 // pred_fallthru
          _
      $region12: #{tpu_custom_call.1} parent=5 // pred_fallthru
        _
      %p141 = scmp.lt.s32.totalorder %s16, 4
      // Predicated region
      $region21: #{tpu_custom_call.1} parent=5 // pred_check
        %p142 = pneg %p141
      $region22: #{tpu_custom_call.1} parent=5 // pred_check_branch
        %144 = sbr.rel (%p142) target = $region24
      $region23: #{tpu_custom_call.1} parent=5 // pred_region
        // Predicated region
        $region25: #{tpu_custom_call.1} parent=23 // pred_check
          %p145 = pneg %p36
        $region26: #{tpu_custom_call.1} parent=23 // pred_check_branch
          %147 = sbr.rel (%p145) target = $region28
        $region27: #{tpu_custom_call.1} parent=23 // pred_region
          %s148 = sand.u32 %s26, 1
          %s149 = scalar_lea.sflag [#allocation3], %s148
          %s150 = sand.u32 %s26, 1
          %s151 = smul.addr %s150, 24
          %s152 = scalar_lea.vmem [#allocation2], %s151
          %s153 = smul.u32 6, %s16
          %s155 = ssub.s32 384, 384
          %156 = vsyncadd %s149, %s155
          %s157 = smul.addr %s153, 64
          %s158 = scalar_lea.hbm %s0, %s157
          %s159 = sshll.u32 %s152, 4
          %s160 = int_to_ptr.vmem [resolvable:$true] %s159
          %165 = dma.hbm_to_vmem [thread:$0]  %s158, 384, %s160, %s149, 64, 64, 4
        $region28: #{tpu_custom_call.1} parent=23 // pred_fallthru
          _
      $region24: #{tpu_custom_call.1} parent=5 // pred_fallthru
        _
      %p166 = scmp.le.s32.totalorder 1, %s16
      %p167 = scmp.lt.s32.totalorder %s16, 5
      %p168 = pnand %p166, %p167
      %p169 = pneg %p168
      // Predicated region
      $region29: #{tpu_custom_call.1} parent=5 // pred_check
        _
      $region30: #{tpu_custom_call.1} parent=5 // pred_check_branch
        %171 = sbr.rel (%p168) target = $region32
      $region31: #{tpu_custom_call.1} parent=5 // pred_region
        %s172 = ssub.s32 %s16, 1
        %s173 = sand.u32 %s29, 1
        %s174 = scalar_lea.sflag [#allocation3], %s173
        %s175 = sand.u32 %s29, 1
        %s176 = smul.addr %s175, 24
        %s177 = scalar_lea.vmem [#allocation2], %s176
        // Predicated region
        $region33: #{tpu_custom_call.1} parent=31 // pred_check
          %p178 = pneg %p42
        $region34: #{tpu_custom_call.1} parent=31 // pred_check_branch
          %180 = sbr.rel (%p178) target = $region36
        $region35: #{tpu_custom_call.1} parent=31 // pred_region
          %181 = dma.done %s174, 384
        $region36: #{tpu_custom_call.1} parent=31 // pred_fallthru
          _
        // Predicated region
        $region37: #{tpu_custom_call.1} parent=31 // pred_check
          %p182 = pneg %p63
        $region38: #{tpu_custom_call.1} parent=31 // pred_check_branch
          %184 = sbr.rel (%p182) target = $region40
        $region39: #{tpu_custom_call.1} parent=31 // pred_region
          %185 = dma.done [#allocation6], 3072
        $region40: #{tpu_custom_call.1} parent=31 // pred_fallthru
          _
        %s186 = sand.u32 %s29, 1
        %s187 = scalar_lea.sflag [#allocation3], %s186
        %s188 = sand.u32 %s29, 1
        %s189 = smul.addr %s188, 24
        %s190 = scalar_lea.vmem [#allocation2], %s189
        %p191 = pneg %p42
        %p192 = pneg %p39
        %p193 = pneg %p63
        %p194 = pneg %p60
        %p195 = pneg %p84
        %p196 = pneg %p81
        %p197 = pneg %p110
        %p198 = pneg %p107
        %s199 = sand.u32 %s97, 1
        %s200 = scalar_lea.sflag [#allocation4], %s199
        %s201 = sand.u32 %s97, 1
        %s202 = smul.addr %s201, 144
        %s203 = scalar_lea.vmem [#allocation7], %s202
        %s204 = smul.u32 6, %s21
        %s205 = smul.u32 6, %s21
        %v207 = vld [vmem:[%s177] sm:$0xf]
        %v208 = vld [vmem:[%s177 + $0x4] sm:$0xf]
        %v209 = vld [vmem:[%s177 + $0x8] sm:$0xf]
        %v210 = vld [vmem:[%s177 + $0xc] sm:$0xf]
        %v211 = vld [vmem:[%s177 + $0x10] sm:$0xf]
        %v212 = vld [vmem:[%s177 + $0x14] sm:$0xf]
        %v213 = vld [vmem:[#allocation5] sm:$0xff]
        %v214 = vld [vmem:[#allocation5 + $0x8] sm:$0xf]
        %v215 = vld [vmem:[#allocation5 + $0xc] sm:$0xff]
        %v216 = vld [vmem:[#allocation5 + $0x14] sm:$0xf]
        %v217 = vld [vmem:[#allocation5 + $0x18] sm:$0xff]
        %v218 = vld [vmem:[#allocation5 + $0x20] sm:$0xf]
        %v219 = vld [vmem:[#allocation5 + $0x24] sm:$0xff]
        %v220 = vld [vmem:[#allocation5 + $0x2c] sm:$0xf]
        %v221 = vld [vmem:[#allocation5 + $0x30] sm:$0xff]
        %v222 = vld [vmem:[#allocation5 + $0x38] sm:$0xf]
        %v223 = vld [vmem:[#allocation5 + $0x3c] sm:$0xff]
        %v224 = vld [vmem:[#allocation5 + $0x44] sm:$0xf]
        %v225 = vld [vmem:[#allocation5 + $0x48] sm:$0xff]
        %v226 = vld [vmem:[#allocation5 + $0x50] sm:$0xf]
        %v227 = vld [vmem:[#allocation5 + $0x54] sm:$0xff]
        %v228 = vld [vmem:[#allocation5 + $0x5c] sm:$0xf]
        %v229 = vld [vmem:[#allocation5 + $0x60] sm:$0xff]
        %v230 = vld [vmem:[#allocation5 + $0x68] sm:$0xf]
        %v231 = vld [vmem:[#allocation5 + $0x6c] sm:$0xff]
        %v232 = vld [vmem:[#allocation5 + $0x74] sm:$0xf]
        %v233 = vld [vmem:[#allocation5 + $0x78] sm:$0xff]
        %v234 = vld [vmem:[#allocation5 + $0x80] sm:$0xf]
        %v235 = vld [vmem:[#allocation5 + $0x84] sm:$0xff]
        %v236 = vld [vmem:[#allocation5 + $0x8c] sm:$0xf]
        %v237 = vld [vmem:[#allocation5 + $0x90] sm:$0xff]
        %v238 = vld [vmem:[#allocation5 + $0x98] sm:$0xf]
        %v239 = vld [vmem:[#allocation5 + $0x9c] sm:$0xff]
        %v240 = vld [vmem:[#allocation5 + $0xa4] sm:$0xf]
        %v241 = vld [vmem:[#allocation5 + $0xa8] sm:$0xff]
        %v242 = vld [vmem:[#allocation5 + $0xb0] sm:$0xf]
        %v243 = vld [vmem:[#allocation5 + $0xb4] sm:$0xff]
        %v244 = vld [vmem:[#allocation5 + $0xbc] sm:$0xf]
        %v245 = vld [vmem:[%s2] sm:$0x7]
        %v247 = vlaneseq
        %v248 = vshrl.u32 %v247, 7
        %v249 = vsub.s32 0, %v248
        %v250 = vrot.slane %v245, %v249
        %v251 = vlaneseq
        %v252 = vshrl.u32 %v251, 7
        %v253 = vsub.s32 1, %v252
        %v254 = vrot.slane %v245, %v253
        %v255 = vlaneseq
        %v256 = vshrl.u32 %v255, 7
        %v257 = vsub.s32 2, %v256
        %v258 = vrot.slane %v245, %v257
        %v268 = vunpack.c.l.b16 %v207
        %v269 = vunpack.c.l.b16 %v208
        %v270 = vunpack.c.l.b16 %v209
        %v271 = vunpack.c.l.b16 %v210
        %v272 = vunpack.c.l.b16 %v211
        %v273 = vunpack.c.l.b16 %v212
        %v274 = vpack.c.b16 %v269, %v268
        %v275 = vpack.c.b16 %v271, %v270
        %v276 = vpack.c.b16 %v273, %v272
        %v312 = vunpack.c.l.b16 %v213
        %v313 = vunpack.c.h.b16 %v213
        %v314 = vunpack.c.l.b16 %v214
        %v315 = vunpack.c.l.b16 %v215
        %v316 = vunpack.c.h.b16 %v215
        %v317 = vunpack.c.l.b16 %v216
        %v318 = vunpack.c.l.b16 %v217
        %v319 = vunpack.c.h.b16 %v217
        %v320 = vunpack.c.l.b16 %v218
        %v321 = vunpack.c.l.b16 %v219
        %v322 = vunpack.c.h.b16 %v219
        %v323 = vunpack.c.l.b16 %v220
        %v324 = vunpack.c.l.b16 %v221
        %v325 = vunpack.c.h.b16 %v221
        %v326 = vunpack.c.l.b16 %v222
        %v327 = vunpack.c.l.b16 %v223
        %v328 = vunpack.c.h.b16 %v223
        %v329 = vunpack.c.l.b16 %v224
        %v330 = vunpack.c.l.b16 %v225
        %v331 = vunpack.c.h.b16 %v225
        %v332 = vunpack.c.l.b16 %v226
        %v333 = vunpack.c.l.b16 %v227
        %v334 = vunpack.c.h.b16 %v227
        %v335 = vunpack.c.l.b16 %v228
        %v336 = vunpack.c.l.b16 %v229
        %v337 = vunpack.c.h.b16 %v229
        %v338 = vunpack.c.l.b16 %v230
        %v339 = vunpack.c.l.b16 %v231
        %v340 = vunpack.c.h.b16 %v231
        %v341 = vunpack.c.l.b16 %v232
        %v342 = vunpack.c.l.b16 %v233
        %v343 = vunpack.c.h.b16 %v233
        %v344 = vunpack.c.l.b16 %v234
        %v345 = vunpack.c.l.b16 %v235
        %v346 = vunpack.c.h.b16 %v235
        %v347 = vunpack.c.l.b16 %v236
        %v348 = vunpack.c.l.b16 %v237
        %v349 = vunpack.c.h.b16 %v237
        %v350 = vunpack.c.l.b16 %v238
        %v351 = vunpack.c.l.b16 %v239
        %v352 = vunpack.c.h.b16 %v239
        %v353 = vunpack.c.l.b16 %v240
        %v354 = vunpack.c.l.b16 %v241
        %v355 = vunpack.c.h.b16 %v241
        %v356 = vunpack.c.l.b16 %v242
        %v357 = vunpack.c.l.b16 %v243
        %v358 = vunpack.c.h.b16 %v243
        %v359 = vunpack.c.l.b16 %v244
        %v360 = vpack.c.b16 %v315, %v312
        %v361 = vpack.c.b16 %v316, %v313
        %v362 = vpack.c.b16 %v317, %v314
        %v363 = vpack.c.b16 %v321, %v318
        %v364 = vpack.c.b16 %v322, %v319
        %v365 = vpack.c.b16 %v323, %v320
        %v366 = vpack.c.b16 %v327, %v324
        %v367 = vpack.c.b16 %v328, %v325
        %v368 = vpack.c.b16 %v329, %v326
        %v369 = vpack.c.b16 %v333, %v330
        %v370 = vpack.c.b16 %v334, %v331
        %v371 = vpack.c.b16 %v335, %v332
        %v372 = vpack.c.b16 %v339, %v336
        %v373 = vpack.c.b16 %v340, %v337
        %v374 = vpack.c.b16 %v341, %v338
        %v375 = vpack.c.b16 %v345, %v342
        %v376 = vpack.c.b16 %v346, %v343
        %v377 = vpack.c.b16 %v347, %v344
        %v378 = vpack.c.b16 %v351, %v348
        %v379 = vpack.c.b16 %v352, %v349
        %v380 = vpack.c.b16 %v353, %v350
        %v381 = vpack.c.b16 %v357, %v354
        %v382 = vpack.c.b16 %v358, %v355
        %v383 = vpack.c.b16 %v359, %v356
        %408 = vmatprep.subr.bf16.mxu0 %v382
        %409 = vmatpush1.bf16.msra.mxu0 %v381
        %410 = vmatprep.subr.bf16.mxu0 %v379
        %411 = vmatpush1.bf16.msra.mxu0 %v378
        %412 = vmatprep.subr.bf16.mxu0 %v376
        %413 = vmatpush1.bf16.msra.mxu0 %v375
        %414 = vmatprep.subr.bf16.mxu0 %v373
        %415 = vmatpush1.bf16.msra.mxu0 %v372
        %416 = vmatprep.subr.bf16.mxu0 %v370
        %417 = vmatpush1.bf16.msra.mxu0 %v369
        %418 = vmatprep.subr.bf16.mxu0 %v367
        %419 = vmatpush1.bf16.msra.mxu0 %v366
        %420 = vmatprep.subr.bf16.mxu0 %v364
        %421 = vmatpush1.bf16.msra.mxu0 %v363
        %422 = vmatprep.subr.bf16.mxu0 %v361
        %423 = vmatpush1.bf16.msra.mxu0 %v360
        %424 = vmatprep.subr.bf16.mxu0 0
        %425 = vmatpush2.bf16.msra.mxu0 0
        %426 = vmatprep.subr.bf16.mxu0 0
        %427 = vmatpush2.bf16.msra.mxu0 0
        %428 = vmatprep.subr.bf16.mxu0 0
        %429 = vmatpush2.bf16.msra.mxu0 0
        %430 = vmatprep.subr.bf16.mxu0 0
        %431 = vmatpush2.bf16.msra.mxu0 0
        %432 = vmatprep.subr.bf16.mxu0 0
        %433 = vmatpush2.bf16.msra.mxu0 0
        %434 = vmatprep.subr.bf16.mxu0 0
        %435 = vmatpush2.bf16.msra.mxu0 0
        %436 = vmatprep.subr.bf16.mxu0 0
        %437 = vmatpush2.bf16.msra.mxu0 0
        %438 = vmatprep.subr.bf16.mxu0 0
        %439 = vmatpush2.bf16.msra.mxu0 0
        %440 = vmatprep.mubr.bf16.mxu0 0
        %441 = vmatmul.mubr.bf16.gmra.mxu0 %v274
        %v442 = vpop.f32.mrf.mxu0
        %v443 = vadd.f32 %v250, %v442
        %v444 = vpop.f32.mrf.mxu0
        %v445 = vadd.f32 %v254, %v444
        %v446 = vpop.f32.mrf.mxu0
        %v447 = vadd.f32 %v250, %v446
        %v448 = vpop.f32.mrf.mxu0
        %v449 = vadd.f32 %v254, %v448
        %450 = vmatprep.mubr.bf16.mxu0 0
        %451 = vmatmul.mubr.bf16.gmra.mxu0 %v275
        %v452 = vpop.f32.mrf.mxu0
        %v453 = vadd.f32 %v250, %v452
        %v454 = vpop.f32.mrf.mxu0
        %v455 = vadd.f32 %v254, %v454
        %v456 = vpop.f32.mrf.mxu0
        %v457 = vadd.f32 %v250, %v456
        %v458 = vpop.f32.mrf.mxu0
        %v459 = vadd.f32 %v254, %v458
        %460 = vmatprep.mubr.bf16.mxu0 0
        %461 = vmatmul.mubr.bf16.gmra.mxu0 %v276
        %v462 = vpop.f32.mrf.mxu0
        %v463 = vadd.f32 %v250, %v462
        %v464 = vpop.f32.mrf.mxu0
        %v465 = vadd.f32 %v254, %v464
        %v466 = vpop.f32.mrf.mxu0
        %v467 = vadd.f32 %v250, %v466
        %v468 = vpop.f32.mrf.mxu0
        %v469 = vadd.f32 %v254, %v468
        %470 = vdwg.mxu0
        %471 = vmatprep.subr.bf16.mxu0 0
        %472 = vmatpush1.bf16.msra.mxu0 %v383
        %473 = vmatprep.subr.bf16.mxu0 0
        %474 = vmatpush1.bf16.msra.mxu0 %v380
        %475 = vmatprep.subr.bf16.mxu0 0
        %476 = vmatpush1.bf16.msra.mxu0 %v377
        %477 = vmatprep.subr.bf16.mxu0 0
        %478 = vmatpush1.bf16.msra.mxu0 %v374
        %479 = vmatprep.subr.bf16.mxu0 0
        %480 = vmatpush1.bf16.msra.mxu0 %v371
        %481 = vmatprep.subr.bf16.mxu0 0
        %482 = vmatpush1.bf16.msra.mxu0 %v368
        %483 = vmatprep.subr.bf16.mxu0 0
        %484 = vmatpush1.bf16.msra.mxu0 %v365
        %485 = vmatprep.subr.bf16.mxu0 0
        %486 = vmatpush1.bf16.msra.mxu0 %v362
        %487 = vmatprep.subr.bf16.mxu0 0
        %488 = vmatpush2.bf16.msra.mxu0 0
        %489 = vmatprep.subr.bf16.mxu0 0
        %490 = vmatpush2.bf16.msra.mxu0 0
        %491 = vmatprep.subr.bf16.mxu0 0
        %492 = vmatpush2.bf16.msra.mxu0 0
        %493 = vmatprep.subr.bf16.mxu0 0
        %494 = vmatpush2.bf16.msra.mxu0 0
        %495 = vmatprep.subr.bf16.mxu0 0
        %496 = vmatpush2.bf16.msra.mxu0 0
        %497 = vmatprep.subr.bf16.mxu0 0
        %498 = vmatpush2.bf16.msra.mxu0 0
        %499 = vmatprep.subr.bf16.mxu0 0
        %500 = vmatpush2.bf16.msra.mxu0 0
        %501 = vmatprep.subr.bf16.mxu0 0
        %502 = vmatpush2.bf16.msra.mxu0 0
        %503 = vmatprep.mubr.bf16.mxu0 0
        %504 = vmatmul.mubr.bf16.gmra.mxu0 %v274
        %v505 = vpop.f32.mrf.mxu0
        %v506 = vadd.f32 %v258, %v505
        %v507 = vpop.f32.mrf.mxu0
        %v508 = vpop.f32.mrf.mxu0
        %v509 = vadd.f32 %v258, %v508
        %v510 = vpop.f32.mrf.mxu0
        %511 = vmatprep.mubr.bf16.mxu0 0
        %512 = vmatmul.mubr.bf16.gmra.mxu0 %v275
        %v513 = vpop.f32.mrf.mxu0
        %v514 = vadd.f32 %v258, %v513
        %v515 = vpop.f32.mrf.mxu0
        %v516 = vpop.f32.mrf.mxu0
        %v517 = vadd.f32 %v258, %v516
        %v518 = vpop.f32.mrf.mxu0
        %519 = vmatprep.mubr.bf16.mxu0 0
        %520 = vmatmul.mubr.bf16.gmra.mxu0 %v276
        %v521 = vpop.f32.mrf.mxu0
        %v522 = vadd.f32 %v258, %v521
        %v523 = vpop.f32.mrf.mxu0
        %v524 = vpop.f32.mrf.mxu0
        %v525 = vadd.f32 %v258, %v524
        %v526 = vpop.f32.mrf.mxu0
        %527 = vdwg.mxu0
        %v528 = vlaneseq
        %v529 = vand.u32 %v528, 127
        %vm530 = vcmp.ge.s32.totalorder %v529, 0
        %vm531 = vcmp.lt.s32.totalorder %v529, 20
        %vm532 = vmand %vm530, %vm531
        %v533 = vsel %vm532, %v443, -1e+30
        %v534 = vsel %vm532, %v447, -1e+30
        %v535 = vsel %vm532, %v453, -1e+30
        %v536 = vsel %vm532, %v457, -1e+30
        %v537 = vsel %vm532, %v463, -1e+30
        %v538 = vsel %vm532, %v467, -1e+30
        %539 = vmax.xlane.f32.xlu0 %v533
        %v540 = vpop.xlane.xlu0 %539
        %541 = vmax.xlane.f32.xlu0 %v534
        %v542 = vpop.xlane.xlu0 %541
        %543 = vmax.xlane.f32.xlu0 %v535
        %v544 = vpop.xlane.xlu0 %543
        %545 = vmax.xlane.f32.xlu0 %v536
        %v546 = vpop.xlane.xlu0 %545
        %547 = vmax.xlane.f32.xlu0 %v537
        %v548 = vpop.xlane.xlu0 %547
        %549 = vmax.xlane.f32.xlu0 %v538
        %v550 = vpop.xlane.xlu0 %549
        %v551 = vsub.f32 %v533, %v540
        %v552 = vsub.f32 %v534, %v542
        %v553 = vsub.f32 %v535, %v544
        %v554 = vsub.f32 %v536, %v546
        %v555 = vsub.f32 %v537, %v548
        %v556 = vsub.f32 %v538, %v550
        %v557 = vmul.f32 %v551, 1.442695
        %v558 = vpow.pop %v557
        %v559 = vmul.f32 %v552, 1.442695
        %v560 = vpow.pop %v559
        %v561 = vmul.f32 %v553, 1.442695
        %v562 = vpow.pop %v561
        %v563 = vmul.f32 %v554, 1.442695
        %v564 = vpow.pop %v563
        %v565 = vmul.f32 %v555, 1.442695
        %v566 = vpow.pop %v565
        %v567 = vmul.f32 %v556, 1.442695
        %v568 = vpow.pop %v567
        %569 = vadd.xlane.f32.xlu0 %v558
        %v570 = vpop.xlane.xlu0 %569
        %571 = vadd.xlane.f32.xlu0 %v560
        %v572 = vpop.xlane.xlu0 %571
        %573 = vadd.xlane.f32.xlu0 %v562
        %v574 = vpop.xlane.xlu0 %573
        %575 = vadd.xlane.f32.xlu0 %v564
        %v576 = vpop.xlane.xlu0 %575
        %577 = vadd.xlane.f32.xlu0 %v566
        %v578 = vpop.xlane.xlu0 %577
        %579 = vadd.xlane.f32.xlu0 %v568
        %v580 = vpop.xlane.xlu0 %579
        %v581 = vrcp.pop %v570
        %v582 = vmul.f32 %v558, %v581
        %v583 = vrcp.pop %v572
        %v584 = vmul.f32 %v560, %v583
        %v585 = vrcp.pop %v574
        %v586 = vmul.f32 %v562, %v585
        %v587 = vrcp.pop %v576
        %v588 = vmul.f32 %v564, %v587
        %v589 = vrcp.pop %v578
        %v590 = vmul.f32 %v566, %v589
        %v591 = vrcp.pop %v580
        %v592 = vmul.f32 %v568, %v591
        %v593 = vsel %vm532, %v582, %v443
        %v594 = vsel %vm532, %v584, %v447
        %v595 = vsel %vm532, %v586, %v453
        %v596 = vsel %vm532, %v588, %v457
        %v597 = vsel %vm532, %v590, %v463
        %v598 = vsel %vm532, %v592, %v467
        %vm599 = vcmp.ge.s32.totalorder %v529, 40
        %vm600 = vcmp.lt.s32.totalorder %v529, 60
        %vm601 = vmand %vm599, %vm600
        %v602 = vsel %vm601, %v443, -1e+30
        %v603 = vsel %vm601, %v447, -1e+30
        %v604 = vsel %vm601, %v453, -1e+30
        %v605 = vsel %vm601, %v457, -1e+30
        %v606 = vsel %vm601, %v463, -1e+30
        %v607 = vsel %vm601, %v467, -1e+30
        %608 = vmax.xlane.f32.xlu0 %v602
        %v609 = vpop.xlane.xlu0 %608
        %610 = vmax.xlane.f32.xlu0 %v603
        %v611 = vpop.xlane.xlu0 %610
        %612 = vmax.xlane.f32.xlu0 %v604
        %v613 = vpop.xlane.xlu0 %612
        %614 = vmax.xlane.f32.xlu0 %v605
        %v615 = vpop.xlane.xlu0 %614
        %616 = vmax.xlane.f32.xlu0 %v606
        %v617 = vpop.xlane.xlu0 %616
        %618 = vmax.xlane.f32.xlu0 %v607
        %v619 = vpop.xlane.xlu0 %618
        %v620 = vsub.f32 %v602, %v609
        %v621 = vsub.f32 %v603, %v611
        %v622 = vsub.f32 %v604, %v613
        %v623 = vsub.f32 %v605, %v615
        %v624 = vsub.f32 %v606, %v617
        %v625 = vsub.f32 %v607, %v619
        %v626 = vmul.f32 %v620, 1.442695
        %v627 = vpow.pop %v626
        %v628 = vmul.f32 %v621, 1.442695
        %v629 = vpow.pop %v628
        %v630 = vmul.f32 %v622, 1.442695
        %v631 = vpow.pop %v630
        %v632 = vmul.f32 %v623, 1.442695
        %v633 = vpow.pop %v632
        %v634 = vmul.f32 %v624, 1.442695
        %v635 = vpow.pop %v634
        %v636 = vmul.f32 %v625, 1.442695
        %v637 = vpow.pop %v636
        %638 = vadd.xlane.f32.xlu0 %v627
        %v639 = vpop.xlane.xlu0 %638
        %640 = vadd.xlane.f32.xlu0 %v629
        %v641 = vpop.xlane.xlu0 %640
        %642 = vadd.xlane.f32.xlu0 %v631
        %v643 = vpop.xlane.xlu0 %642
        %644 = vadd.xlane.f32.xlu0 %v633
        %v645 = vpop.xlane.xlu0 %644
        %646 = vadd.xlane.f32.xlu0 %v635
        %v647 = vpop.xlane.xlu0 %646
        %648 = vadd.xlane.f32.xlu0 %v637
        %v649 = vpop.xlane.xlu0 %648
        %v650 = vrcp.pop %v639
        %v651 = vmul.f32 %v627, %v650
        %v652 = vrcp.pop %v641
        %v653 = vmul.f32 %v629, %v652
        %v654 = vrcp.pop %v643
        %v655 = vmul.f32 %v631, %v654
        %v656 = vrcp.pop %v645
        %v657 = vmul.f32 %v633, %v656
        %v658 = vrcp.pop %v647
        %v659 = vmul.f32 %v635, %v658
        %v660 = vrcp.pop %v649
        %v661 = vmul.f32 %v637, %v660
        %v662 = vsel %vm601, %v651, %v593
        %v663 = vsel %vm601, %v653, %v594
        %v664 = vsel %vm601, %v655, %v595
        %v665 = vsel %vm601, %v657, %v596
        %v666 = vsel %vm601, %v659, %v597
        %v667 = vsel %vm601, %v661, %v598
        %vm668 = vcmp.ge.s32.totalorder %v529, 60
        %vm669 = vcmp.lt.s32.totalorder %v529, 80
        %vm670 = vmand %vm668, %vm669
        %v671 = vsel %vm670, %v443, -1e+30
        %v672 = vsel %vm670, %v447, -1e+30
        %v673 = vsel %vm670, %v453, -1e+30
        %v674 = vsel %vm670, %v457, -1e+30
        %v675 = vsel %vm670, %v463, -1e+30
        %v676 = vsel %vm670, %v467, -1e+30
        %677 = vmax.xlane.f32.xlu0 %v671
        %v678 = vpop.xlane.xlu0 %677
        %679 = vmax.xlane.f32.xlu0 %v672
        %v680 = vpop.xlane.xlu0 %679
        %681 = vmax.xlane.f32.xlu0 %v673
        %v682 = vpop.xlane.xlu0 %681
        %683 = vmax.xlane.f32.xlu0 %v674
        %v684 = vpop.xlane.xlu0 %683
        %685 = vmax.xlane.f32.xlu0 %v675
        %v686 = vpop.xlane.xlu0 %685
        %687 = vmax.xlane.f32.xlu0 %v676
        %v688 = vpop.xlane.xlu0 %687
        %v689 = vsub.f32 %v671, %v678
        %v690 = vsub.f32 %v672, %v680
        %v691 = vsub.f32 %v673, %v682
        %v692 = vsub.f32 %v674, %v684
        %v693 = vsub.f32 %v675, %v686
        %v694 = vsub.f32 %v676, %v688
        %v695 = vmul.f32 %v689, 1.442695
        %v696 = vpow.pop %v695
        %v697 = vmul.f32 %v690, 1.442695
        %v698 = vpow.pop %v697
        %v699 = vmul.f32 %v691, 1.442695
        %v700 = vpow.pop %v699
        %v701 = vmul.f32 %v692, 1.442695
        %v702 = vpow.pop %v701
        %v703 = vmul.f32 %v693, 1.442695
        %v704 = vpow.pop %v703
        %v705 = vmul.f32 %v694, 1.442695
        %v706 = vpow.pop %v705
        %707 = vadd.xlane.f32.xlu0 %v696
        %v708 = vpop.xlane.xlu0 %707
        %709 = vadd.xlane.f32.xlu0 %v698
        %v710 = vpop.xlane.xlu0 %709
        %711 = vadd.xlane.f32.xlu0 %v700
        %v712 = vpop.xlane.xlu0 %711
        %713 = vadd.xlane.f32.xlu0 %v702
        %v714 = vpop.xlane.xlu0 %713
        %715 = vadd.xlane.f32.xlu0 %v704
        %v716 = vpop.xlane.xlu0 %715
        %717 = vadd.xlane.f32.xlu0 %v706
        %v718 = vpop.xlane.xlu0 %717
        %v719 = vrcp.pop %v708
        %v720 = vmul.f32 %v696, %v719
        %v721 = vrcp.pop %v710
        %v722 = vmul.f32 %v698, %v721
        %v723 = vrcp.pop %v712
        %v724 = vmul.f32 %v700, %v723
        %v725 = vrcp.pop %v714
        %v726 = vmul.f32 %v702, %v725
        %v727 = vrcp.pop %v716
        %v728 = vmul.f32 %v704, %v727
        %v729 = vrcp.pop %v718
        %v730 = vmul.f32 %v706, %v729
        %v731 = vsel %vm670, %v720, %v662
        %v732 = vsel %vm670, %v722, %v663
        %v733 = vsel %vm670, %v724, %v664
        %v734 = vsel %vm670, %v726, %v665
        %v735 = vsel %vm670, %v728, %v666
        %v736 = vsel %vm670, %v730, %v667
        %vm737 = vcmp.ge.s32.totalorder %v529, 80
        %vm738 = vcmp.lt.s32.totalorder %v529, 100
        %vm739 = vmand %vm737, %vm738
        %v740 = vsel %vm739, %v443, -1e+30
        %v741 = vsel %vm739, %v447, -1e+30
        %v742 = vsel %vm739, %v453, -1e+30
        %v743 = vsel %vm739, %v457, -1e+30
        %v744 = vsel %vm739, %v463, -1e+30
        %v745 = vsel %vm739, %v467, -1e+30
        %746 = vmax.xlane.f32.xlu0 %v740
        %v747 = vpop.xlane.xlu0 %746
        %748 = vmax.xlane.f32.xlu0 %v741
        %v749 = vpop.xlane.xlu0 %748
        %750 = vmax.xlane.f32.xlu0 %v742
        %v751 = vpop.xlane.xlu0 %750
        %752 = vmax.xlane.f32.xlu0 %v743
        %v753 = vpop.xlane.xlu0 %752
        %754 = vmax.xlane.f32.xlu0 %v744
        %v755 = vpop.xlane.xlu0 %754
        %756 = vmax.xlane.f32.xlu0 %v745
        %v757 = vpop.xlane.xlu0 %756
        %v758 = vsub.f32 %v740, %v747
        %v759 = vsub.f32 %v741, %v749
        %v760 = vsub.f32 %v742, %v751
        %v761 = vsub.f32 %v743, %v753
        %v762 = vsub.f32 %v744, %v755
        %v763 = vsub.f32 %v745, %v757
        %v764 = vmul.f32 %v758, 1.442695
        %v765 = vpow.pop %v764
        %v766 = vmul.f32 %v759, 1.442695
        %v767 = vpow.pop %v766
        %v768 = vmul.f32 %v760, 1.442695
        %v769 = vpow.pop %v768
        %v770 = vmul.f32 %v761, 1.442695
        %v771 = vpow.pop %v770
        %v772 = vmul.f32 %v762, 1.442695
        %v773 = vpow.pop %v772
        %v774 = vmul.f32 %v763, 1.442695
        %v775 = vpow.pop %v774
        %776 = vadd.xlane.f32.xlu0 %v765
        %v777 = vpop.xlane.xlu0 %776
        %778 = vadd.xlane.f32.xlu0 %v767
        %v779 = vpop.xlane.xlu0 %778
        %780 = vadd.xlane.f32.xlu0 %v769
        %v781 = vpop.xlane.xlu0 %780
        %782 = vadd.xlane.f32.xlu0 %v771
        %v783 = vpop.xlane.xlu0 %782
        %784 = vadd.xlane.f32.xlu0 %v773
        %v785 = vpop.xlane.xlu0 %784
        %786 = vadd.xlane.f32.xlu0 %v775
        %v787 = vpop.xlane.xlu0 %786
        %v788 = vrcp.pop %v777
        %v789 = vmul.f32 %v765, %v788
        %v790 = vrcp.pop %v779
        %v791 = vmul.f32 %v767, %v790
        %v792 = vrcp.pop %v781
        %v793 = vmul.f32 %v769, %v792
        %v794 = vrcp.pop %v783
        %v795 = vmul.f32 %v771, %v794
        %v796 = vrcp.pop %v785
        %v797 = vmul.f32 %v773, %v796
        %v798 = vrcp.pop %v787
        %v799 = vmul.f32 %v775, %v798
        %v800 = vsel %vm739, %v789, %v731
        %v801 = vsel %vm739, %v791, %v732
        %v802 = vsel %vm739, %v793, %v733
        %v803 = vsel %vm739, %v795, %v734
        %v804 = vsel %vm739, %v797, %v735
        %v805 = vsel %vm739, %v799, %v736
        %806 = vst [vmem:[%s203] sm:$0xff] %v800
        %807 = vst [vmem:[%s203 + $0x18] sm:$0xff] %v801
        %808 = vst [vmem:[%s203 + $0x30] sm:$0xff] %v802
        %809 = vst [vmem:[%s203 + $0x48] sm:$0xff] %v803
        %810 = vst [vmem:[%s203 + $0x60] sm:$0xff] %v804
        %811 = vst [vmem:[%s203 + $0x78] sm:$0xff] %v805
        %812 = vst [vmem:[%s203 + $0x8] sm:$0xff] %v445
        %813 = vst [vmem:[%s203 + $0x10] sm:$0xff] %v506
        %814 = vst [vmem:[%s203 + $0x20] sm:$0xff] %v449
        %815 = vst [vmem:[%s203 + $0x28] sm:$0xff] %v509
        %816 = vst [vmem:[%s203 + $0x38] sm:$0xff] %v455
        %817 = vst [vmem:[%s203 + $0x40] sm:$0xff] %v514
        %818 = vst [vmem:[%s203 + $0x50] sm:$0xff] %v459
        %819 = vst [vmem:[%s203 + $0x58] sm:$0xff] %v517
        %820 = vst [vmem:[%s203 + $0x68] sm:$0xff] %v465
        %821 = vst [vmem:[%s203 + $0x70] sm:$0xff] %v522
        %822 = vst [vmem:[%s203 + $0x80] sm:$0xff] %v469
        %823 = vst [vmem:[%s203 + $0x88] sm:$0xff] %v525
        %s824 = sand.u32 %s97, 1
        %s825 = scalar_lea.sflag [#allocation4], %s824
        %s826 = sand.u32 %s97, 1
        %s827 = smul.addr %s826, 144
        %s828 = scalar_lea.vmem [#allocation7], %s827
        // Predicated region
        $region41: #{tpu_custom_call.1} parent=31 // pred_check
          %p829 = pneg %p107
        $region42: #{tpu_custom_call.1} parent=31 // pred_check_branch
          %831 = sbr.rel (%p829) target = $region44
        $region43: #{tpu_custom_call.1} parent=31 // pred_region
          %s832 = smul.u32 6, %s21
          %s834 = ssub.s32 2304, 2304
          %835 = vsyncadd %s825, %s834
          %s836 = smul.addr %s832, 3
          %s837 = smul.addr %s836, 128
          %s838 = scalar_lea.hbm %s3, %s837
          %s839 = sshll.u32 %s828, 4
          %s840 = int_to_ptr.vmem [resolvable:$true] %s839
          %845 = dma.vmem_to_hbm [thread:$0]  %s840, 2304, %s838, %s825, 384, 384, 24
        $region44: #{tpu_custom_call.1} parent=31 // pred_fallthru
          _
      $region32: #{tpu_custom_call.1} parent=5 // pred_fallthru
        _
      %p846 = scmp.le.s32.totalorder 2, %s16
      // Predicated region
      $region45: #{tpu_custom_call.1} parent=5 // pred_check
        %p847 = pneg %p846
      $region46: #{tpu_custom_call.1} parent=5 // pred_check_branch
        %849 = sbr.rel (%p847) target = $region48
      $region47: #{tpu_custom_call.1} parent=5 // pred_region
        %s850 = ssub.s32 %s16, 2
        // Predicated region
        $region49: #{tpu_custom_call.1} parent=47 // pred_check
          %p851 = pneg %p113
        $region50: #{tpu_custom_call.1} parent=47 // pred_check_branch
          %853 = sbr.rel (%p851) target = $region52
        $region51: #{tpu_custom_call.1} parent=47 // pred_region
          %s854 = sand.u32 %s98, 1
          %s855 = scalar_lea.sflag [#allocation4], %s854
          %s856 = sand.u32 %s98, 1
          %s857 = smul.addr %s856, 144
          %s858 = scalar_lea.vmem [#allocation7], %s857
          %859 = dma.done %s855, 2304
        $region52: #{tpu_custom_call.1} parent=47 // pred_fallthru
          _
      $region48: #{tpu_custom_call.1} parent=5 // pred_fallthru
        _
    $region6: #{tpu_custom_call.1} parent=1 // loop_footer
      %s20 = sadd.s32 1, %s16
    $region7: #{tpu_custom_call.1} parent=1 // loop_footer_branch
      %15 = sbr.rel target = $region3
    $region8: #{tpu_custom_call.1} parent=1 // loop_exit
      _
    %860 = vsyncpa [#allocation3], 1
    %s861 = scalar_lea.sflag [#allocation3], 1
    %862 = vsyncpa %s861, 1
    %863 = vsyncpa [#allocation6], 1
    %864 = vsyncpa [#allocation4], 1
    %s865 = scalar_lea.sflag [#allocation4], 1
    %866 = vsyncpa %s865, 1

</llo_original>
